<compile_context>
chip_gen: v7x
topology: tpu7x:2x2x1
jax: 0.10.0
libtpu: 0.0.40
codegen_flags: <defaults>
</compile_context>

<pallas_src>
import jax
import jax.numpy as jnp
from jax import lax
from jax.experimental import pallas as pl
from jax.experimental.pallas import tpu as pltpu

EPS = 1e-5
LANE = 128


def _round_up(v, m):
    return (v + m - 1) // m * m


def projection_head_kernel(x_ref, w1_ref, gb1_ref, w2_ref, gb2_ref, o_ref):
    inv_n = jnp.float32(1.0 / x_ref.shape[0])  # static batch size -> constant

    # ---- layer 1: Linear (no bias) on the MXU, native dtype, f32 accumulate ----
    # x: (N, in_p), w1: (hidden_p, in_p) — contract dim 1 of both (x @ w1.T),
    # no transposed weight copy needed.
    h = lax.dot_general(
        x_ref[...], w1_ref[...],
        dimension_numbers=(((1,), (1,)), ((), ())),
        preferred_element_type=jnp.float32,
    )  # (N, hidden_p) f32

    # BatchNorm1d over the batch (biased variance), single reduction pass, f32.
    mean1 = jnp.sum(h, axis=0, keepdims=True) * inv_n
    msq1 = jnp.sum(h * h, axis=0, keepdims=True) * inv_n
    var1 = jnp.maximum(msq1 - mean1 * mean1, 0.0)

    g1 = gb1_ref[0:1, :].astype(jnp.float32)
    b1 = gb1_ref[1:2, :].astype(jnp.float32)
    scale1 = g1 * lax.rsqrt(var1 + EPS)          # (1, hidden_p), rsqrt on EUP
    shift1 = b1 - mean1 * scale1
    h = jnp.maximum(h * scale1 + shift1, 0.0)    # fused BN affine + ReLU (VPU)

    # ---- layer 2: Linear (no bias) -> BatchNorm1d ----
    y = lax.dot_general(
        h.astype(w2_ref.dtype), w2_ref[...],
        dimension_numbers=(((1,), (1,)), ((), ())),
        preferred_element_type=jnp.float32,
    )  # (N, out_p) f32

    mean2 = jnp.sum(y, axis=0, keepdims=True) * inv_n
    msq2 = jnp.sum(y * y, axis=0, keepdims=True) * inv_n
    var2 = jnp.maximum(msq2 - mean2 * mean2, 0.0)

    g2 = gb2_ref[0:1, :].astype(jnp.float32)
    b2 = gb2_ref[1:2, :].astype(jnp.float32)
    scale2 = g2 * lax.rsqrt(var2 + EPS)
    shift2 = b2 - mean2 * scale2

    o_ref[...] = (y * scale2 + shift2).astype(o_ref.dtype)


def projection_head(x, w1, g1, b1, w2, g2, b2):
    """x: (N, in); w1: (hidden, in); w2: (out, hidden) — PyTorch layouts."""
    n, in_f = x.shape
    hidden = w1.shape[0]
    out = w2.shape[0]

    in_p = _round_up(in_f, LANE)
    hid_p = _round_up(hidden, LANE)
    out_p = _round_up(out, LANE)

    # Lane-dense zero padding of the feature dims (no-ops when already aligned).
    # The batch dim is NOT padded — BN statistics must run over the real batch.
    if in_p != in_f:
        x = jnp.pad(x, ((0, 0), (0, in_p - in_f)))
        w1 = jnp.pad(w1, ((0, 0), (0, in_p - in_f)))
    if hid_p != hidden:
        w1 = jnp.pad(w1, ((0, hid_p - hidden), (0, 0)))
        g1 = jnp.pad(g1, (0, hid_p - hidden))
        b1 = jnp.pad(b1, (0, hid_p - hidden))
        w2 = jnp.pad(w2, ((0, 0), (0, hid_p - hidden)))
    if out_p != out:
        w2 = jnp.pad(w2, ((0, out_p - out), (0, 0)))
        g2 = jnp.pad(g2, (0, out_p - out))
        b2 = jnp.pad(b2, (0, out_p - out))

    gb1 = jnp.stack([g1, b1]).astype(jnp.float32)   # (2, hid_p)
    gb2 = jnp.stack([g2, b2]).astype(jnp.float32)   # (2, out_p)

    flops = 2 * n * (in_p * hid_p + hid_p * out_p)
    bytes_accessed = (
        x.size * x.dtype.itemsize
        + w1.size * w1.dtype.itemsize
        + w2.size * w2.dtype.itemsize
        + gb1.size * 4 + gb2.size * 4
        + n * out_p * x.dtype.itemsize
    )

    vmem = pl.BlockSpec(memory_space=pltpu.VMEM)
    y_pad = pl.pallas_call(
        projection_head_kernel,
        out_shape=jax.ShapeDtypeStruct((n, out_p), x.dtype),
        in_specs=[vmem, vmem, vmem, vmem, vmem],
        out_specs=vmem,
        compiler_params=pltpu.CompilerParams(vmem_limit_bytes=48 << 20),
        cost_estimate=pl.CostEstimate(
            flops=flops,
            transcendentals=hid_p + out_p,   # the two rsqrt rows
            bytes_accessed=bytes_accessed,
        ),
    )(x, w1, gb1, w2, gb2)

    return y_pad[:, :out]


def _reference(x, w1, g1, b1, w2, g2, b2):
    h = x.astype(jnp.float32) @ w1.astype(jnp.float32).T
    m = h.mean(0, keepdims=True)
    v = ((h - m) ** 2).mean(0, keepdims=True)
    h = (h - m) / jnp.sqrt(v + EPS) * g1 + b1
    h = jnp.maximum(h, 0.0)
    y = h @ w2.astype(jnp.float32).T
    m = y.mean(0, keepdims=True)
    v = ((y - m) ** 2).mean(0, keepdims=True)
    y = (y - m) / jnp.sqrt(v + EPS) * g2 + b2
    return y.astype(x.dtype)


if __name__ == "__main__":
    # Small shapes consistent with ProjectionHead(in, hidden, out, 'nonlinear').
    batch, in_features, hidden_features, out_features = 8, 32, 64, 16

    key = jax.random.PRNGKey(0)
    kx, kw1, kw2 = jax.random.split(key, 3)

    x = jax.random.normal(kx, (batch, in_features), dtype=jnp.float32)

    lim1 = 1.0 / jnp.sqrt(jnp.float32(in_features))
    lim2 = 1.0 / jnp.sqrt(jnp.float32(hidden_features))
    w1 = jax.random.uniform(kw1, (hidden_features, in_features),
                            minval=-lim1, maxval=lim1, dtype=jnp.float32)
    w2 = jax.random.uniform(kw2, (out_features, hidden_features),
                            minval=-lim2, maxval=lim2, dtype=jnp.float32)
    g1 = jnp.ones((hidden_features,), jnp.float32)
    b1 = jnp.zeros((hidden_features,), jnp.float32)
    g2 = jnp.ones((out_features,), jnp.float32)
    b2 = jnp.zeros((out_features,), jnp.float32)

    run = jax.jit(projection_head)
    out = jax.block_until_ready(run(x, w1, g1, b1, w2, g2, b2))

    ref = _reference(x, w1, g1, b1, w2, g2, b2)
    assert out.shape == (batch, out_features)
    assert jnp.allclose(out, ref, atol=1e-4, rtol=1e-4), "mismatch vs reference"

    print("KERNEL_OK")
</pallas_src>

<mosaic_0001>
module attributes {stable_mosaic.version = 11 : i64} {
  func.func @projection_head_kernel(%arg0: memref<8x128xf32, #tpu.memory_space<vmem>>, %arg1: memref<128x128xf32, #tpu.memory_space<vmem>>, %arg2: memref<2x128xf32, #tpu.memory_space<vmem>>, %arg3: memref<128x128xf32, #tpu.memory_space<vmem>>, %arg4: memref<2x128xf32, #tpu.memory_space<vmem>>, %arg5: memref<8x128xf32, #tpu.memory_space<vmem>>) attributes {dimension_semantics = [], scalar_prefetch = 0 : i64, scratch_operands = 0 : i64, tpu.core_type = #tpu.core_type<tc>} {
    %c0 = arith.constant 0 : index
    %c0_0 = arith.constant 0 : index
    %0 = vector.load %arg0[%c0, %c0_0] : memref<8x128xf32, #tpu.memory_space<vmem>>, vector<8x128xf32>
    %c0_1 = arith.constant 0 : index
    %c0_2 = arith.constant 0 : index
    %1 = vector.load %arg1[%c0_1, %c0_2] : memref<128x128xf32, #tpu.memory_space<vmem>>, vector<128x128xf32>
    %cst = arith.constant dense<0.000000e+00> : vector<8x128xf32>
    %2 = tpu.matmul %0, %1, %cst {dimension_numbers = #tpu.dot_dimension_numbers<[1], [1], [0], [0], [0, 0, 1, 0], [], []>} : vector<8x128xf32>, vector<128x128xf32>, vector<8x128xf32> -> vector<8x128xf32>
    %cst_3 = arith.constant dense<0.000000e+00> : vector<128xf32>
    %3 = vector.multi_reduction <add>, %2, %cst_3 [0] : vector<8x128xf32> to vector<128xf32>
    %4 = vector.shape_cast %3 : vector<128xf32> to vector<1x128xf32>
    %cst_4 = arith.constant 1.250000e-01 : f32
    %5 = vector.broadcast %cst_4 : f32 to vector<1x128xf32>
    %6 = arith.mulf %4, %5 : vector<1x128xf32>
    %7 = arith.mulf %2, %2 : vector<8x128xf32>
    %cst_5 = arith.constant dense<0.000000e+00> : vector<128xf32>
    %8 = vector.multi_reduction <add>, %7, %cst_5 [0] : vector<8x128xf32> to vector<128xf32>
    %9 = vector.shape_cast %8 : vector<128xf32> to vector<1x128xf32>
    %cst_6 = arith.constant 1.250000e-01 : f32
    %10 = vector.broadcast %cst_6 : f32 to vector<1x128xf32>
    %11 = arith.mulf %9, %10 : vector<1x128xf32>
    %12 = arith.mulf %6, %6 : vector<1x128xf32>
    %13 = arith.subf %11, %12 : vector<1x128xf32>
    %cst_7 = arith.constant 0.000000e+00 : f32
    %14 = vector.broadcast %cst_7 : f32 to vector<1x128xf32>
    %15 = arith.maximumf %13, %14 : vector<1x128xf32>
    %c0_8 = arith.constant 0 : index
    %c0_9 = arith.constant 0 : index
    %16 = vector.load %arg2[%c0_8, %c0_9] : memref<2x128xf32, #tpu.memory_space<vmem>>, vector<1x128xf32>
    %c1 = arith.constant 1 : index
    %c0_10 = arith.constant 0 : index
    %17 = vector.load %arg2[%c1, %c0_10] : memref<2x128xf32, #tpu.memory_space<vmem>>, vector<1x128xf32>
    %cst_11 = arith.constant 9.99999974E-6 : f32
    %18 = vector.broadcast %cst_11 : f32 to vector<1x128xf32>
    %19 = arith.addf %15, %18 : vector<1x128xf32>
    %20 = math.rsqrt %19 : vector<1x128xf32>
    %21 = arith.mulf %16, %20 : vector<1x128xf32>
    %22 = arith.mulf %6, %21 : vector<1x128xf32>
    %23 = arith.subf %17, %22 : vector<1x128xf32>
    %24 = vector.broadcast %21 : vector<1x128xf32> to vector<8x128xf32>
    %25 = arith.mulf %2, %24 : vector<8x128xf32>
    %26 = vector.broadcast %23 : vector<1x128xf32> to vector<8x128xf32>
    %27 = arith.addf %25, %26 : vector<8x128xf32>
    %cst_12 = arith.constant 0.000000e+00 : f32
    %28 = vector.broadcast %cst_12 : f32 to vector<8x128xf32>
    %29 = arith.maximumf %27, %28 : vector<8x128xf32>
    %c0_13 = arith.constant 0 : index
    %c0_14 = arith.constant 0 : index
    %30 = vector.load %arg3[%c0_13, %c0_14] : memref<128x128xf32, #tpu.memory_space<vmem>>, vector<128x128xf32>
    %cst_15 = arith.constant dense<0.000000e+00> : vector<8x128xf32>
    %31 = tpu.matmul %29, %30, %cst_15 {dimension_numbers = #tpu.dot_dimension_numbers<[1], [1], [0], [0], [0, 0, 1, 0], [], []>} : vector<8x128xf32>, vector<128x128xf32>, vector<8x128xf32> -> vector<8x128xf32>
    %cst_16 = arith.constant dense<0.000000e+00> : vector<128xf32>
    %32 = vector.multi_reduction <add>, %31, %cst_16 [0] : vector<8x128xf32> to vector<128xf32>
    %33 = vector.shape_cast %32 : vector<128xf32> to vector<1x128xf32>
    %cst_17 = arith.constant 1.250000e-01 : f32
    %34 = vector.broadcast %cst_17 : f32 to vector<1x128xf32>
    %35 = arith.mulf %33, %34 : vector<1x128xf32>
    %36 = arith.mulf %31, %31 : vector<8x128xf32>
    %cst_18 = arith.constant dense<0.000000e+00> : vector<128xf32>
    %37 = vector.multi_reduction <add>, %36, %cst_18 [0] : vector<8x128xf32> to vector<128xf32>
    %38 = vector.shape_cast %37 : vector<128xf32> to vector<1x128xf32>
    %cst_19 = arith.constant 1.250000e-01 : f32
    %39 = vector.broadcast %cst_19 : f32 to vector<1x128xf32>
    %40 = arith.mulf %38, %39 : vector<1x128xf32>
    %41 = arith.mulf %35, %35 : vector<1x128xf32>
    %42 = arith.subf %40, %41 : vector<1x128xf32>
    %cst_20 = arith.constant 0.000000e+00 : f32
    %43 = vector.broadcast %cst_20 : f32 to vector<1x128xf32>
    %44 = arith.maximumf %42, %43 : vector<1x128xf32>
    %c0_21 = arith.constant 0 : index
    %c0_22 = arith.constant 0 : index
    %45 = vector.load %arg4[%c0_21, %c0_22] : memref<2x128xf32, #tpu.memory_space<vmem>>, vector<1x128xf32>
    %c1_23 = arith.constant 1 : index
    %c0_24 = arith.constant 0 : index
    %46 = vector.load %arg4[%c1_23, %c0_24] : memref<2x128xf32, #tpu.memory_space<vmem>>, vector<1x128xf32>
    %cst_25 = arith.constant 9.99999974E-6 : f32
    %47 = vector.broadcast %cst_25 : f32 to vector<1x128xf32>
    %48 = arith.addf %44, %47 : vector<1x128xf32>
    %49 = math.rsqrt %48 : vector<1x128xf32>
    %50 = arith.mulf %45, %49 : vector<1x128xf32>
    %51 = arith.mulf %35, %50 : vector<1x128xf32>
    %52 = arith.subf %46, %51 : vector<1x128xf32>
    %53 = vector.broadcast %50 : vector<1x128xf32> to vector<8x128xf32>
    %54 = arith.mulf %31, %53 : vector<8x128xf32>
    %55 = vector.broadcast %52 : vector<1x128xf32> to vector<8x128xf32>
    %56 = arith.addf %54, %55 : vector<8x128xf32>
    %c0_26 = arith.constant 0 : index
    %c0_27 = arith.constant 0 : index
    %57 = vector.load %arg5[%c0_26, %c0_27] : memref<8x128xf32, #tpu.memory_space<vmem>>, vector<8x128xf32>
    tpu.vector_store %arg5[%c0_26, %c0_27], %56 {strides = array<i32>} : memref<8x128xf32, #tpu.memory_space<vmem>>, vector<8x128xf32>,
    return
  }
}

</mosaic_0001>

<llo_original>
// kernel: projection_head.1
$region0: #{projection_head.1}
  #allocation0 [shape = 'u32[]', space=smem, size = 0x4, offset = 0x4, fixed_abs, tag = 'smem constant byte address 0x4 - core index']
  #allocation1 [shape = 'u32[144,128]{1,0:T(1,128)}', space=vmem, size = 0x12000, scoped, tag = 'internal scratch']
  %s0 = inlined_call_operand.vmem [shape: f32[8,128], index: 0, kind: input, shape index: {}]
  %s1 = inlined_call_operand.vmem [shape: f32[128,128], index: 1, kind: input, shape index: {}]
  %s2 = inlined_call_operand.vmem [shape: f32[2,128], index: 2, kind: input, shape index: {}]
  %s3 = inlined_call_operand.vmem [shape: f32[128,128], index: 3, kind: input, shape index: {}]
  %s4 = inlined_call_operand.vmem [shape: f32[2,128], index: 4, kind: input, shape index: {}]
  %s5 = inlined_call_operand.hbm [shape: f32[8,128], index: 5, kind: output, shape index: {}]
  %s6 = sld [smem:[#allocation0]]
  $region30: #{projection_head.1} parent=0
    _
  %s8 = ssub.s32 1, %s6
  %s9 = scalar_select 0, %s8, %s6
  $region1: #{projection_head.1} parent=0
    #allocation2 [shape = 'u8[4096]{0}', space=vmem, size = 0x1000, scoped, tag = 'output window, operand 0, single buffered']
    #allocation3 [shape = 's32[1]{0}', space=sflag, size = 0x4, scoped, tag = 'scoped memory for projection_head.1']
    %10 = vsyncpa [#allocation3], 0
    // Predicated region
    $region2: #{projection_head.1} parent=1 // pred_check
      _
    $region3: #{projection_head.1} parent=1 // pred_check_branch
      %12 = sbr.rel (0) target = $region5
    $region4: #{projection_head.1} parent=1 // pred_region
      _
    $region5: #{projection_head.1} parent=1 // pred_fallthru
      _
    // Predicated region
    $region6: #{projection_head.1} parent=1 // pred_check
      _
    $region7: #{projection_head.1} parent=1 // pred_check_branch
      %14 = sbr.rel (0) target = $region9
    $region8: #{projection_head.1} parent=1 // pred_region
      _
    $region9: #{projection_head.1} parent=1 // pred_fallthru
      _
    // Predicated region
    $region10: #{projection_head.1} parent=1 // pred_check
      _
    $region11: #{projection_head.1} parent=1 // pred_check_branch
      %16 = sbr.rel (0) target = $region13
    $region12: #{projection_head.1} parent=1 // pred_region
      _
    $region13: #{projection_head.1} parent=1 // pred_fallthru
      _
    // Predicated region
    $region14: #{projection_head.1} parent=1 // pred_check
      _
    $region15: #{projection_head.1} parent=1 // pred_check_branch
      %18 = sbr.rel (0) target = $region17
    $region16: #{projection_head.1} parent=1 // pred_region
      _
    $region17: #{projection_head.1} parent=1 // pred_fallthru
      _
    // Predicated region
    $region18: #{projection_head.1} parent=1 // pred_check
      _
    $region19: #{projection_head.1} parent=1 // pred_check_branch
      %20 = sbr.rel (0) target = $region21
    $region20: #{projection_head.1} parent=1 // pred_region
      _
    $region21: #{projection_head.1} parent=1 // pred_fallthru
      _
    %v21 = vld [vmem:[%s0] sm:$0xff]
    %v22 = vld [vmem:[%s1] sm:$0xff]
    %v23 = vld [vmem:[%s1 + $0x8] sm:$0xff]
    %v24 = vld [vmem:[%s1 + $0x10] sm:$0xff]
    %v25 = vld [vmem:[%s1 + $0x18] sm:$0xff]
    %v26 = vld [vmem:[%s1 + $0x20] sm:$0xff]
    %v27 = vld [vmem:[%s1 + $0x28] sm:$0xff]
    %v28 = vld [vmem:[%s1 + $0x30] sm:$0xff]
    %v29 = vld [vmem:[%s1 + $0x38] sm:$0xff]
    %v30 = vld [vmem:[%s1 + $0x40] sm:$0xff]
    %v31 = vld [vmem:[%s1 + $0x48] sm:$0xff]
    %v32 = vld [vmem:[%s1 + $0x50] sm:$0xff]
    %v33 = vld [vmem:[%s1 + $0x58] sm:$0xff]
    %v34 = vld [vmem:[%s1 + $0x60] sm:$0xff]
    %v35 = vld [vmem:[%s1 + $0x68] sm:$0xff]
    %v36 = vld [vmem:[%s1 + $0x70] sm:$0xff]
    %v37 = vld [vmem:[%s1 + $0x78] sm:$0xff]
    %38 = vmatprep.subr.mxu0 0.0
    %39 = vmatpush1.xpose.msra.mxu0 %v22
    %40 = vmatprep.subr.mxu0 0.0
    %41 = vmatpush1.xpose.msra.mxu0 %v23
    %42 = vmatprep.subr.mxu0 0.0
    %43 = vmatpush1.xpose.msra.mxu0 %v24
    %44 = vmatprep.subr.mxu0 0.0
    %45 = vmatpush1.xpose.msra.mxu0 %v25
    %46 = vmatprep.subr.mxu0 0.0
    %47 = vmatpush1.xpose.msra.mxu0 %v26
    %48 = vmatprep.subr.mxu0 0.0
    %49 = vmatpush1.xpose.msra.mxu0 %v27
    %50 = vmatprep.subr.mxu0 0.0
    %51 = vmatpush1.xpose.msra.mxu0 %v28
    %52 = vmatprep.subr.mxu0 0.0
    %53 = vmatpush1.xpose.msra.mxu0 %v29
    %54 = vmatprep.subr.mxu0 0.0
    %55 = vmatpush1.xpose.msra.mxu0 %v30
    %56 = vmatprep.subr.mxu0 0.0
    %57 = vmatpush1.xpose.msra.mxu0 %v31
    %58 = vmatprep.subr.mxu0 0.0
    %59 = vmatpush1.xpose.msra.mxu0 %v32
    %60 = vmatprep.subr.mxu0 0.0
    %61 = vmatpush1.xpose.msra.mxu0 %v33
    %62 = vmatprep.subr.mxu0 0.0
    %63 = vmatpush1.xpose.msra.mxu0 %v34
    %64 = vmatprep.subr.mxu0 0.0
    %65 = vmatpush1.xpose.msra.mxu0 %v35
    %66 = vmatprep.subr.mxu0 0.0
    %67 = vmatpush1.xpose.msra.mxu0 %v36
    %68 = vmatprep.subr.mxu0 0.0
    %69 = vmatpush1.xpose.msra.mxu0 %v37
    %70 = vmatprep.subr.mxu0 0.0
    %71 = vmatpush1.xpose.msra.mxu0 0.0
    %72 = vmatprep.subr.mxu0 0.0
    %73 = vmatpush1.xpose.msra.mxu0 0.0
    %74 = vmatprep.subr.mxu0 0.0
    %75 = vmatpush1.xpose.msra.mxu0 0.0
    %76 = vmatprep.subr.mxu0 0.0
    %77 = vmatpush1.xpose.msra.mxu0 0.0
    %78 = vmatprep.subr.mxu0 0.0
    %79 = vmatpush1.xpose.msra.mxu0 0.0
    %80 = vmatprep.subr.mxu0 0.0
    %81 = vmatpush1.xpose.msra.mxu0 0.0
    %82 = vmatprep.subr.mxu0 0.0
    %83 = vmatpush1.xpose.msra.mxu0 0.0
    %84 = vmatprep.subr.mxu0 0.0
    %85 = vmatpush1.xpose.msra.mxu0 0.0
    %86 = vmatprep.subr.mxu0 0.0
    %87 = vmatpush1.xpose.msra.mxu0 0.0
    %88 = vmatprep.subr.mxu0 0.0
    %89 = vmatpush1.xpose.msra.mxu0 0.0
    %90 = vmatprep.subr.mxu0 0.0
    %91 = vmatpush1.xpose.msra.mxu0 0.0
    %92 = vmatprep.subr.mxu0 0.0
    %93 = vmatpush1.xpose.msra.mxu0 0.0
    %94 = vmatprep.subr.mxu0 0.0
    %95 = vmatpush1.xpose.msra.mxu0 0.0
    %96 = vmatprep.subr.mxu0 0.0
    %97 = vmatpush1.xpose.msra.mxu0 0.0
    %98 = vmatprep.subr.mxu0 0.0
    %99 = vmatpush1.xpose.msra.mxu0 0.0
    %100 = vmatprep.subr.mxu0 0.0
    %101 = vmatpush1.xpose.msra.mxu0 0.0
    %102 = vmatprep.mubr.f32.mxu0 0.0
    %103 = vmatmul.mubr.f32.gmra.mrb[0].mxu0 %v21
    %v104 = vpop.f32.mrb[0].mxu0
    %v105 = vadd.f32 0.0, %v104
    %v106 = vpop.f32.mrb[0].mxu0
    %107 = vdwg.mxu0
    %v108 = vrot.slane %v105, 4
    %v109 = vadd.f32 %v105, %v108
    %v110 = vrot.slane %v109, 2
    %v111 = vadd.f32 %v109, %v110
    %v112 = vrot.slane %v111, 1
    %v113 = vadd.f32 %v111, %v112
    %v114 = vmul.f32 %v113, 0.125
    %v115 = vmul.f32 %v105, %v105
    %v116 = vrot.slane %v115, 4
    %v117 = vadd.f32 %v115, %v116
    %v118 = vrot.slane %v117, 2
    %v119 = vadd.f32 %v117, %v118
    %v120 = vrot.slane %v119, 1
    %v121 = vadd.f32 %v119, %v120
    %v122 = vmul.f32 %v121, 0.125
    %v123 = vmul.f32 %v114, %v114
    %v124 = vsub.f32 %v122, %v123
    %v125 = vmax.f32 %v124, 0.0
    %v126 = vld [vmem:[%s2] sm:$0x1]
    %v127 = vld [vmem:[%s2 + $0x1] sm:$0x1]
    %v128 = vadd.f32 %v125, 1e-05
    %v129 = vrsqrt.pop %v128
    %v130 = vmul.f32 %v126, %v129
    %v131 = vmul.f32 %v114, %v130
    %v132 = vsub.f32 %v127, %v131
    %v133 = vlaneseq
    %v134 = vshrl.u32 %v133, 7
    %v135 = vsub.s32 0, %v134
    %v136 = vrot.slane %v130, %v135
    %v137 = vmul.f32 %v105, %v136
    %v138 = vlaneseq
    %v139 = vshrl.u32 %v138, 7
    %v140 = vsub.s32 0, %v139
    %v141 = vrot.slane %v132, %v140
    %v142 = vadd.f32 %v137, %v141
    %v143 = vmax.f32 %v142, 0.0
    %v144 = vld [vmem:[%s3] sm:$0xff]
    %v145 = vld [vmem:[%s3 + $0x8] sm:$0xff]
    %v146 = vld [vmem:[%s3 + $0x10] sm:$0xff]
    %v147 = vld [vmem:[%s3 + $0x18] sm:$0xff]
    %v148 = vld [vmem:[%s3 + $0x20] sm:$0xff]
    %v149 = vld [vmem:[%s3 + $0x28] sm:$0xff]
    %v150 = vld [vmem:[%s3 + $0x30] sm:$0xff]
    %v151 = vld [vmem:[%s3 + $0x38] sm:$0xff]
    %v152 = vld [vmem:[%s3 + $0x40] sm:$0xff]
    %v153 = vld [vmem:[%s3 + $0x48] sm:$0xff]
    %v154 = vld [vmem:[%s3 + $0x50] sm:$0xff]
    %v155 = vld [vmem:[%s3 + $0x58] sm:$0xff]
    %v156 = vld [vmem:[%s3 + $0x60] sm:$0xff]
    %v157 = vld [vmem:[%s3 + $0x68] sm:$0xff]
    %v158 = vld [vmem:[%s3 + $0x70] sm:$0xff]
    %v159 = vld [vmem:[%s3 + $0x78] sm:$0xff]
    %160 = vmatprep.subr.mxu0 0.0
    %161 = vmatpush1.xpose.msra.mxu0 %v144
    %162 = vmatprep.subr.mxu0 0.0
    %163 = vmatpush1.xpose.msra.mxu0 %v145
    %164 = vmatprep.subr.mxu0 0.0
    %165 = vmatpush1.xpose.msra.mxu0 %v146
    %166 = vmatprep.subr.mxu0 0.0
    %167 = vmatpush1.xpose.msra.mxu0 %v147
    %168 = vmatprep.subr.mxu0 0.0
    %169 = vmatpush1.xpose.msra.mxu0 %v148
    %170 = vmatprep.subr.mxu0 0.0
    %171 = vmatpush1.xpose.msra.mxu0 %v149
    %172 = vmatprep.subr.mxu0 0.0
    %173 = vmatpush1.xpose.msra.mxu0 %v150
    %174 = vmatprep.subr.mxu0 0.0
    %175 = vmatpush1.xpose.msra.mxu0 %v151
    %176 = vmatprep.subr.mxu0 0.0
    %177 = vmatpush1.xpose.msra.mxu0 %v152
    %178 = vmatprep.subr.mxu0 0.0
    %179 = vmatpush1.xpose.msra.mxu0 %v153
    %180 = vmatprep.subr.mxu0 0.0
    %181 = vmatpush1.xpose.msra.mxu0 %v154
    %182 = vmatprep.subr.mxu0 0.0
    %183 = vmatpush1.xpose.msra.mxu0 %v155
    %184 = vmatprep.subr.mxu0 0.0
    %185 = vmatpush1.xpose.msra.mxu0 %v156
    %186 = vmatprep.subr.mxu0 0.0
    %187 = vmatpush1.xpose.msra.mxu0 %v157
    %188 = vmatprep.subr.mxu0 0.0
    %189 = vmatpush1.xpose.msra.mxu0 %v158
    %190 = vmatprep.subr.mxu0 0.0
    %191 = vmatpush1.xpose.msra.mxu0 %v159
    %192 = vmatprep.subr.mxu0 0.0
    %193 = vmatpush1.xpose.msra.mxu0 0.0
    %194 = vmatprep.subr.mxu0 0.0
    %195 = vmatpush1.xpose.msra.mxu0 0.0
    %196 = vmatprep.subr.mxu0 0.0
    %197 = vmatpush1.xpose.msra.mxu0 0.0
    %198 = vmatprep.subr.mxu0 0.0
    %199 = vmatpush1.xpose.msra.mxu0 0.0
    %200 = vmatprep.subr.mxu0 0.0
    %201 = vmatpush1.xpose.msra.mxu0 0.0
    %202 = vmatprep.subr.mxu0 0.0
    %203 = vmatpush1.xpose.msra.mxu0 0.0
    %204 = vmatprep.subr.mxu0 0.0
    %205 = vmatpush1.xpose.msra.mxu0 0.0
    %206 = vmatprep.subr.mxu0 0.0
    %207 = vmatpush1.xpose.msra.mxu0 0.0
    %208 = vmatprep.subr.mxu0 0.0
    %209 = vmatpush1.xpose.msra.mxu0 0.0
    %210 = vmatprep.subr.mxu0 0.0
    %211 = vmatpush1.xpose.msra.mxu0 0.0
    %212 = vmatprep.subr.mxu0 0.0
    %213 = vmatpush1.xpose.msra.mxu0 0.0
    %214 = vmatprep.subr.mxu0 0.0
    %215 = vmatpush1.xpose.msra.mxu0 0.0
    %216 = vmatprep.subr.mxu0 0.0
    %217 = vmatpush1.xpose.msra.mxu0 0.0
    %218 = vmatprep.subr.mxu0 0.0
    %219 = vmatpush1.xpose.msra.mxu0 0.0
    %220 = vmatprep.subr.mxu0 0.0
    %221 = vmatpush1.xpose.msra.mxu0 0.0
    %222 = vmatprep.subr.mxu0 0.0
    %223 = vmatpush1.xpose.msra.mxu0 0.0
    %224 = vmatprep.mubr.f32.mxu0 0.0
    %225 = vmatmul.mubr.f32.gmra.mrb[0].mxu0 %v143
    %v226 = vpop.f32.mrb[0].mxu0
    %v227 = vadd.f32 0.0, %v226
    %v228 = vpop.f32.mrb[0].mxu0
    %229 = vdwg.mxu0
    %v230 = vrot.slane %v227, 4
    %v231 = vadd.f32 %v227, %v230
    %v232 = vrot.slane %v231, 2
    %v233 = vadd.f32 %v231, %v232
    %v234 = vrot.slane %v233, 1
    %v235 = vadd.f32 %v233, %v234
    %v236 = vmul.f32 %v235, 0.125
    %v237 = vmul.f32 %v227, %v227
    %v238 = vrot.slane %v237, 4
    %v239 = vadd.f32 %v237, %v238
    %v240 = vrot.slane %v239, 2
    %v241 = vadd.f32 %v239, %v240
    %v242 = vrot.slane %v241, 1
    %v243 = vadd.f32 %v241, %v242
    %v244 = vmul.f32 %v243, 0.125
    %v245 = vmul.f32 %v236, %v236
    %v246 = vsub.f32 %v244, %v245
    %v247 = vmax.f32 %v246, 0.0
    %v248 = vld [vmem:[%s4] sm:$0x1]
    %v249 = vld [vmem:[%s4 + $0x1] sm:$0x1]
    %v250 = vadd.f32 %v247, 1e-05
    %v251 = vrsqrt.pop %v250
    %v252 = vmul.f32 %v248, %v251
    %v253 = vmul.f32 %v236, %v252
    %v254 = vsub.f32 %v249, %v253
    %v255 = vlaneseq
    %v256 = vshrl.u32 %v255, 7
    %v257 = vsub.s32 0, %v256
    %v258 = vrot.slane %v252, %v257
    %v259 = vmul.f32 %v227, %v258
    %v260 = vlaneseq
    %v261 = vshrl.u32 %v260, 7
    %v262 = vsub.s32 0, %v261
    %v263 = vrot.slane %v254, %v262
    %v264 = vadd.f32 %v259, %v263
    %265 = vst [vmem:[#allocation2] sm:$0xff] %v264
    // Predicated region
    $region22: #{projection_head.1} parent=1 // pred_check
      _
    $region23: #{projection_head.1} parent=1 // pred_check_branch
      %267 = sbr.rel (0) target = $region25
    $region24: #{projection_head.1} parent=1 // pred_region
      %s269 = ssub.s32 128, 128
      %270 = vsyncadd [#allocation3], %s269
      %s272 = sshll.u32 [#allocation2], 4
      %s273 = int_to_ptr.vmem [resolvable:$true] %s272
      %275 = dma.vmem_to_hbm [thread:$0]  %s273, 128, %s5, [#allocation3]
    $region25: #{projection_head.1} parent=1 // pred_fallthru
      _
    // Predicated region
    $region26: #{projection_head.1} parent=1 // pred_check
      _
    $region27: #{projection_head.1} parent=1 // pred_check_branch
      %277 = sbr.rel (0) target = $region29
    $region28: #{projection_head.1} parent=1 // pred_region
      %278 = dma.done [#allocation3], 128
    $region29: #{projection_head.1} parent=1 // pred_fallthru
      _
    %279 = vsyncpa [#allocation3], 1

</llo_original>
